<compile_context>
chip_gen: v5e
topology: v5e:2x2
jax: 0.10.0
libtpu: 0.0.40
codegen_flags: <defaults>
</compile_context>

<pallas_src>
import functools

import jax
import jax.numpy as jnp
from jax.experimental import pallas as pl
from jax.experimental.pallas import tpu as pltpu

_LANE = 128
_SUB = 8


def _round_up(x, m):
    return ((x + m - 1) // m) * m


def _actor_mlp_kernel(x_ref, w1_ref, b1_ref, w2_ref, b2_ref, w3_ref, b3_ref,
                      mu_ref):
    """Fused 3-layer MLP on one batch tile:
    mu = ReLU(ReLU(x@W1+b1)@W2+b2)@W3+b3.

    Weights (and the streamed x) may be bf16; accumulation is always f32 via
    preferred_element_type. Biases stay f32 and are added post-accumulation.
    """
    cdt = w1_ref.dtype  # MXU compute dtype

    # Hidden layer 1
    h1 = jnp.dot(x_ref[...].astype(cdt), w1_ref[...],
                 preferred_element_type=jnp.float32)
    h1 = jnp.maximum(h1 + b1_ref[...], 0.0)

    # Hidden layer 2
    h2 = jnp.dot(h1.astype(cdt), w2_ref[...],
                 preferred_element_type=jnp.float32)
    h2 = jnp.maximum(h2 + b2_ref[...], 0.0)

    # mu head
    mu = jnp.dot(h2.astype(cdt), w3_ref[...],
                 preferred_element_type=jnp.float32)
    mu_ref[...] = (mu + b3_ref[...]).astype(mu_ref.dtype)


def init_params(key, input_dim, hidden_dim, output_dim):
    """PyTorch-equivalent parameters, stored transposed as [in, out]."""
    k1, k2, k3, k4, k5, k6 = jax.random.split(key, 6)
    scale = 0.1
    return {
        "w1": scale * jax.random.normal(k1, (input_dim, hidden_dim), jnp.float32),
        "b1": scale * jax.random.normal(k2, (1, hidden_dim), jnp.float32),
        "w2": scale * jax.random.normal(k3, (hidden_dim, hidden_dim), jnp.float32),
        "b2": scale * jax.random.normal(k4, (1, hidden_dim), jnp.float32),
        "w3": scale * jax.random.normal(k5, (hidden_dim, output_dim), jnp.float32),
        "b3": scale * jax.random.normal(k6, (1, output_dim), jnp.float32),
        # nn.Parameter(torch.zeros(output_dim))
        "log_std": jnp.zeros((1, output_dim), jnp.float32),
    }


def prepare_params(params, compute_dtype=jnp.bfloat16):
    """One-time parameter prep, hoisted out of the per-step path.

    * Hidden/contraction dim padded to a lane multiple of 128 (zero pad is
      exact through bias+ReLU). Streamed dims (input_dim, output_dim) are NOT
      padded.
    * Weights cast to the MXU compute dtype; biases stay f32.
    Returns a pure array pytree (shapes/dtypes carry all the static metadata).
    """
    w1, b1 = params["w1"], params["b1"]
    w2, b2 = params["w2"], params["b2"]
    w3, b3 = params["w3"], params["b3"]
    hid = w1.shape[1]
    hid_p = _round_up(hid, _LANE)
    dh = hid_p - hid

    return {
        "w1": jnp.pad(w1, ((0, 0), (0, dh))).astype(compute_dtype),
        "b1": jnp.pad(b1, ((0, 0), (0, dh))),
        "w2": jnp.pad(w2, ((0, dh), (0, dh))).astype(compute_dtype),
        "b2": jnp.pad(b2, ((0, 0), (0, dh))),
        "w3": jnp.pad(w3, ((0, dh), (0, 0))).astype(compute_dtype),
        "b3": b3,
        "log_std": params["log_std"],
    }


@functools.partial(jax.jit, static_argnames=("block_b",))
def actor_forward(state, prepped, *, block_b=512):
    """Runs the fused MLP kernel. state: [B, input_dim].

    Returns (mu, std) with shapes [B, output_dim]; std = exp(log_std)
    broadcast over the batch (matches torch `log_std.exp().expand_as(mu)`).
    `prepped` comes from prepare_params() (call it once, not per step).
    """
    w1, b1 = prepped["w1"], prepped["b1"]
    w2, b2 = prepped["w2"], prepped["b2"]
    w3, b3 = prepped["w3"], prepped["b3"]
    log_std = prepped["log_std"]

    B, in_dim = state.shape
    hid_p = w1.shape[1]
    out_dim = w3.shape[1]
    cdt = w1.dtype  # MXU compute dtype (bf16 default)

    # Batch tile: sublane-multiple, and split so large B gives >=2 grid steps
    # (both v7x TensorCores get work under dimension_semantics=("parallel",)).
    tb = max(_SUB, min(_round_up(block_b, _SUB),
                       _round_up(pl.cdiv(B, 2), _SUB)))
    b_p = _round_up(B, tb)
    grid = (b_p // tb,)

    # Stream x in the compute dtype (halves the dominant HBM read when bf16).
    # In a real stepping loop, produce `state` already in this dtype upstream
    # so the cast fuses there instead of being a separate pass.
    x = state.astype(cdt)
    if b_p != B:
        x = jnp.pad(x, ((0, b_p - B), (0, 0)))

    # ---- tight VMEM budget (v7x only has 64 MiB per TC) ----
    w_item = jnp.dtype(cdt).itemsize
    x_item = jnp.dtype(x.dtype).itemsize
    weight_bytes = (w1.size + w2.size + w3.size) * w_item
    bias_bytes = (b1.size + b2.size + b3.size) * 4
    stream_bytes = 2 * (tb * in_dim * x_item + tb * out_dim * 4)  # dbl-buffered tiles
    staging_bytes = 2 * tb * hid_p * 4                            # h1/h2 intermediates
    vmem_limit = int(min(max(weight_bytes + bias_bytes + stream_bytes
                             + staging_bytes + (2 << 20), 4 << 20), 64 << 20))

    # ---- honest cost hint (true streamed bytes after de-padding) ----
    flops = 2 * B * (in_dim * hid_p + hid_p * hid_p + hid_p * out_dim)
    bytes_accessed = (B * in_dim * x_item + B * out_dim * 4
                      + weight_bytes + bias_bytes)
    cost = pl.CostEstimate(flops=flops, transcendentals=0,
                           bytes_accessed=bytes_accessed)

    def resident(a):  # weights/biases: same block every step -> VMEM-resident
        return pl.BlockSpec(a.shape, lambda i: (0, 0))

    mu_p = pl.pallas_call(
        _actor_mlp_kernel,
        out_shape=jax.ShapeDtypeStruct((b_p, out_dim), jnp.float32),
        grid=grid,
        in_specs=[
            # Streamed activations: full (unpadded) feature dim per block.
            pl.BlockSpec((tb, in_dim), lambda i: (i, 0)),
            resident(w1), resident(b1),
            resident(w2), resident(b2),
            resident(w3), resident(b3),
        ],
        out_specs=pl.BlockSpec((tb, out_dim), lambda i: (i, 0)),
        compiler_params=pltpu.CompilerParams(
            dimension_semantics=("parallel",),  # batch tiles are independent
            vmem_limit_bytes=vmem_limit,
        ),
        cost_estimate=cost,
    )(x, w1, b1, w2, b2, w3, b3)

    mu = mu_p[:B] if b_p != B else mu_p
    # std is state-independent: tiny exp + lazy broadcast outside the kernel.
    std = jnp.broadcast_to(jnp.exp(log_std), mu.shape)
    return mu, std


def _reference_forward(state, params):
    h1 = jnp.maximum(state @ params["w1"] + params["b1"], 0.0)
    h2 = jnp.maximum(h1 @ params["w2"] + params["b2"], 0.0)
    mu = h2 @ params["w3"] + params["b3"]
    std = jnp.broadcast_to(jnp.exp(params["log_std"]), mu.shape)
    return mu, std


if __name__ == "__main__":
    # Small shapes consistent with the module's forward (hidden_dim default 64).
    batch, input_dim, hidden_dim, output_dim = 2, 16, 64, 8

    key = jax.random.PRNGKey(0)
    k_params, k_state, k_big = jax.random.split(key, 3)
    params = init_params(k_params, input_dim, hidden_dim, output_dim)
    state = jax.random.normal(k_state, (batch, input_dim), jnp.float32)

    # --- tiny batch, f32 compute: strict check vs plain-JAX reference ---
    prepped_f32 = prepare_params(params, compute_dtype=jnp.float32)  # once
    mu, std = actor_forward(state, prepped_f32)
    jax.block_until_ready((mu, std))
    mu_ref, std_ref = _reference_forward(state, params)
    assert mu.shape == (batch, output_dim) and std.shape == (batch, output_dim)
    assert jnp.allclose(mu, mu_ref, atol=1e-5), "mu mismatch (f32)"
    assert jnp.allclose(std, std_ref, atol=1e-6), "std mismatch"

    # --- larger batch: 2-step parallel batch grid + bf16 MXU path ---
    prepped_bf16 = prepare_params(params)  # bf16 default, hoisted (done once)
    big_state = jax.random.normal(k_big, (300, input_dim), jnp.float32)
    mu_b, std_b = actor_forward(big_state, prepped_bf16)
    jax.block_until_ready((mu_b, std_b))
    mu_b_ref, std_b_ref = _reference_forward(big_state, params)
    assert mu_b.shape == (300, output_dim)
    assert jnp.allclose(mu_b, mu_b_ref, atol=2e-2, rtol=2e-2), "mu mismatch (bf16)"
    assert jnp.allclose(std_b, std_b_ref, atol=1e-6), "std mismatch (big)"

    # TODO(synk): the torch module returns a Normal(mu, std) distribution
    # object; (mu, std) fully parameterize it (sample / log_prob are trivial).
    print("KERNEL_OK")
</pallas_src>

<mosaic_0001>
module attributes {stable_mosaic.version = 11 : i64} {
  func.func @_actor_mlp_kernel(%arg0: i32, %arg1: memref<8x16xf32, #tpu.memory_space<vmem>>, %arg2: memref<16x128xf32, #tpu.memory_space<vmem>>, %arg3: memref<1x128xf32, #tpu.memory_space<vmem>>, %arg4: memref<128x128xf32, #tpu.memory_space<vmem>>, %arg5: memref<1x128xf32, #tpu.memory_space<vmem>>, %arg6: memref<128x8xf32, #tpu.memory_space<vmem>>, %arg7: memref<1x8xf32, #tpu.memory_space<vmem>>, %arg8: memref<8x8xf32, #tpu.memory_space<vmem>>) attributes {dimension_semantics = [#tpu.dimension_semantics<parallel>], iteration_bounds = array<i64: 1>, scalar_prefetch = 0 : i64, scratch_operands = 0 : i64, tpu.core_type = #tpu.core_type<tc>, window_params = [{transform_indices = @transform_0, window_bounds = array<i64: 8, 16>}, {pipeline_mode = #tpu.pipeline_mode<synchronous>, transform_indices = @transform_1, window_bounds = array<i64: 16, 128>}, {pipeline_mode = #tpu.pipeline_mode<synchronous>, transform_indices = @transform_2, window_bounds = array<i64: 1, 128>}, {pipeline_mode = #tpu.pipeline_mode<synchronous>, transform_indices = @transform_3, window_bounds = array<i64: 128, 128>}, {pipeline_mode = #tpu.pipeline_mode<synchronous>, transform_indices = @transform_4, window_bounds = array<i64: 1, 128>}, {pipeline_mode = #tpu.pipeline_mode<synchronous>, transform_indices = @transform_5, window_bounds = array<i64: 128, 8>}, {pipeline_mode = #tpu.pipeline_mode<synchronous>, transform_indices = @transform_6, window_bounds = array<i64: 1, 8>}, {transform_indices = @transform_7, window_bounds = array<i64: 8, 8>}]} {
    %c0 = arith.constant 0 : index
    %c0_0 = arith.constant 0 : index
    %0 = vector.load %arg1[%c0, %c0_0] : memref<8x16xf32, #tpu.memory_space<vmem>>, vector<8x16xf32>
    %c0_1 = arith.constant 0 : index
    %c0_2 = arith.constant 0 : index
    %1 = vector.load %arg2[%c0_1, %c0_2] : memref<16x128xf32, #tpu.memory_space<vmem>>, vector<16x128xf32>
    %cst = arith.constant dense<0.000000e+00> : vector<8x128xf32>
    %2 = tpu.matmul %0, %1, %cst {dimension_numbers = #tpu.dot_dimension_numbers<[1], [0], [0], [1], [0, 0, 1, 1], [], []>} : vector<8x16xf32>, vector<16x128xf32>, vector<8x128xf32> -> vector<8x128xf32>
    %c0_3 = arith.constant 0 : index
    %c0_4 = arith.constant 0 : index
    %3 = vector.load %arg3[%c0_3, %c0_4] : memref<1x128xf32, #tpu.memory_space<vmem>>, vector<1x128xf32>
    %4 = vector.broadcast %3 : vector<1x128xf32> to vector<8x128xf32>
    %5 = arith.addf %2, %4 : vector<8x128xf32>
    %cst_5 = arith.constant 0.000000e+00 : f32
    %6 = vector.broadcast %cst_5 : f32 to vector<8x128xf32>
    %7 = arith.maximumf %5, %6 : vector<8x128xf32>
    %c0_6 = arith.constant 0 : index
    %c0_7 = arith.constant 0 : index
    %8 = vector.load %arg4[%c0_6, %c0_7] : memref<128x128xf32, #tpu.memory_space<vmem>>, vector<128x128xf32>
    %cst_8 = arith.constant dense<0.000000e+00> : vector<8x128xf32>
    %9 = tpu.matmul %7, %8, %cst_8 {dimension_numbers = #tpu.dot_dimension_numbers<[1], [0], [0], [1], [0, 0, 1, 1], [], []>} : vector<8x128xf32>, vector<128x128xf32>, vector<8x128xf32> -> vector<8x128xf32>
    %c0_9 = arith.constant 0 : index
    %c0_10 = arith.constant 0 : index
    %10 = vector.load %arg5[%c0_9, %c0_10] : memref<1x128xf32, #tpu.memory_space<vmem>>, vector<1x128xf32>
    %11 = vector.broadcast %10 : vector<1x128xf32> to vector<8x128xf32>
    %12 = arith.addf %9, %11 : vector<8x128xf32>
    %cst_11 = arith.constant 0.000000e+00 : f32
    %13 = vector.broadcast %cst_11 : f32 to vector<8x128xf32>
    %14 = arith.maximumf %12, %13 : vector<8x128xf32>
    %c0_12 = arith.constant 0 : index
    %c0_13 = arith.constant 0 : index
    %15 = vector.load %arg6[%c0_12, %c0_13] : memref<128x8xf32, #tpu.memory_space<vmem>>, vector<128x8xf32>
    %cst_14 = arith.constant dense<0.000000e+00> : vector<8x8xf32>
    %16 = tpu.matmul %14, %15, %cst_14 {dimension_numbers = #tpu.dot_dimension_numbers<[1], [0], [0], [1], [0, 0, 1, 1], [], []>} : vector<8x128xf32>, vector<128x8xf32>, vector<8x8xf32> -> vector<8x8xf32>
    %c0_15 = arith.constant 0 : index
    %c0_16 = arith.constant 0 : index
    %17 = vector.load %arg7[%c0_15, %c0_16] : memref<1x8xf32, #tpu.memory_space<vmem>>, vector<1x8xf32>
    %18 = vector.broadcast %17 : vector<1x8xf32> to vector<8x8xf32>
    %19 = arith.addf %16, %18 : vector<8x8xf32>
    %c0_17 = arith.constant 0 : index
    %c0_18 = arith.constant 0 : index
    %20 = vector.load %arg8[%c0_17, %c0_18] : memref<8x8xf32, #tpu.memory_space<vmem>>, vector<8x8xf32>
    tpu.vector_store %arg8[%c0_17, %c0_18], %19 {strides = array<i32>} : memref<8x8xf32, #tpu.memory_space<vmem>>, vector<8x8xf32>,
    return
  }
  func.func @transform_0(%arg0: i32) -> (i32, i32) {
    %c0_i32 = arith.constant 0 : i32
    %c0_i32_0 = arith.constant 0 : i32
    return %arg0, %c0_i32 : i32, i32
  }
  func.func @transform_1(%arg0: i32) -> (i32, i32) {
    %c0_i32 = arith.constant 0 : i32
    %c0_i32_0 = arith.constant 0 : i32
    %c0_i32_1 = arith.constant 0 : i32
    return %c0_i32, %c0_i32_0 : i32, i32
  }
  func.func @transform_2(%arg0: i32) -> (i32, i32) {
    %c0_i32 = arith.constant 0 : i32
    %c0_i32_0 = arith.constant 0 : i32
    %c0_i32_1 = arith.constant 0 : i32
    return %c0_i32, %c0_i32_0 : i32, i32
  }
  func.func @transform_3(%arg0: i32) -> (i32, i32) {
    %c0_i32 = arith.constant 0 : i32
    %c0_i32_0 = arith.constant 0 : i32
    %c0_i32_1 = arith.constant 0 : i32
    return %c0_i32, %c0_i32_0 : i32, i32
  }
  func.func @transform_4(%arg0: i32) -> (i32, i32) {
    %c0_i32 = arith.constant 0 : i32
    %c0_i32_0 = arith.constant 0 : i32
    %c0_i32_1 = arith.constant 0 : i32
    return %c0_i32, %c0_i32_0 : i32, i32
  }
  func.func @transform_5(%arg0: i32) -> (i32, i32) {
    %c0_i32 = arith.constant 0 : i32
    %c0_i32_0 = arith.constant 0 : i32
    %c0_i32_1 = arith.constant 0 : i32
    return %c0_i32, %c0_i32_0 : i32, i32
  }
  func.func @transform_6(%arg0: i32) -> (i32, i32) {
    %c0_i32 = arith.constant 0 : i32
    %c0_i32_0 = arith.constant 0 : i32
    %c0_i32_1 = arith.constant 0 : i32
    return %c0_i32, %c0_i32_0 : i32, i32
  }
  func.func @transform_7(%arg0: i32) -> (i32, i32) {
    %c0_i32 = arith.constant 0 : i32
    %c0_i32_0 = arith.constant 0 : i32
    return %arg0, %c0_i32 : i32, i32
  }
}

</mosaic_0001>

<llo_original>
// kernel: actor_forward.1
$region0: #{actor_forward.1}
  #allocation0 [shape = 'u32[]', space=smem, size = 0x4, offset = 0x4, fixed_abs, tag = 'smem constant byte address 0x4 - core index']
  #allocation1 [shape = 'u32[72,128]{1,0:T(1,128)}', space=vmem, size = 0x9000, scoped, tag = 'internal scratch']
  %s0 = inlined_call_operand.vmem [shape: f32[8,16], index: 0, kind: input, shape index: {}]
  %s1 = inlined_call_operand.vmem [shape: f32[16,128], index: 1, kind: input, shape index: {}]
  %s2 = inlined_call_operand.vmem [shape: f32[1,128], index: 2, kind: input, shape index: {}]
  %s3 = inlined_call_operand.vmem [shape: f32[128,128], index: 3, kind: input, shape index: {}]
  %s4 = inlined_call_operand.vmem [shape: f32[1,128], index: 4, kind: input, shape index: {}]
  %s5 = inlined_call_operand.vmem [shape: f32[128,8], index: 5, kind: input, shape index: {}]
  %s6 = inlined_call_operand.hbm [shape: f32[1,8], index: 6, kind: input, shape index: {}]
  %s7 = inlined_call_operand.vmem [shape: f32[8,8], index: 7, kind: output, shape index: {}]
  %s8 = sld [smem:[#allocation0]]
  $region42: #{actor_forward.1} parent=0
    _
  %s10 = ssub.s32 1, %s8
  %s11 = scalar_select 0, %s10, %s8
  $region1: #{actor_forward.1} parent=0
    #allocation2 [shape = 'u8[512]{0}', space=vmem, size = 0x400, scoped, tag = 'input window, operand 6, single buffered']
    #allocation3 [shape = 's32[1]{0}', space=sflag, size = 0x4, scoped, tag = 'scoped memory for actor_forward.1']
    %12 = vsyncpa [#allocation3], 0
    // Predicated region
    $region2: #{actor_forward.1} parent=1 // pred_check
      _
    $region3: #{actor_forward.1} parent=1 // pred_check_branch
      %14 = sbr.rel (0) target = $region5
    $region4: #{actor_forward.1} parent=1 // pred_region
      _
    $region5: #{actor_forward.1} parent=1 // pred_fallthru
      _
    // Predicated region
    $region6: #{actor_forward.1} parent=1 // pred_check
      _
    $region7: #{actor_forward.1} parent=1 // pred_check_branch
      %16 = sbr.rel (0) target = $region9
    $region8: #{actor_forward.1} parent=1 // pred_region
      _
    $region9: #{actor_forward.1} parent=1 // pred_fallthru
      _
    // Predicated region
    $region10: #{actor_forward.1} parent=1 // pred_check
      _
    $region11: #{actor_forward.1} parent=1 // pred_check_branch
      %18 = sbr.rel (0) target = $region13
    $region12: #{actor_forward.1} parent=1 // pred_region
      _
    $region13: #{actor_forward.1} parent=1 // pred_fallthru
      _
    // Predicated region
    $region14: #{actor_forward.1} parent=1 // pred_check
      _
    $region15: #{actor_forward.1} parent=1 // pred_check_branch
      %20 = sbr.rel (0) target = $region17
    $region16: #{actor_forward.1} parent=1 // pred_region
      _
    $region17: #{actor_forward.1} parent=1 // pred_fallthru
      _
    // Predicated region
    $region18: #{actor_forward.1} parent=1 // pred_check
      _
    $region19: #{actor_forward.1} parent=1 // pred_check_branch
      %22 = sbr.rel (0) target = $region21
    $region20: #{actor_forward.1} parent=1 // pred_region
      _
    $region21: #{actor_forward.1} parent=1 // pred_fallthru
      _
    // Predicated region
    $region22: #{actor_forward.1} parent=1 // pred_check
      _
    $region23: #{actor_forward.1} parent=1 // pred_check_branch
      %24 = sbr.rel (0) target = $region25
    $region24: #{actor_forward.1} parent=1 // pred_region
      _
    $region25: #{actor_forward.1} parent=1 // pred_fallthru
      _
    // Predicated region
    $region26: #{actor_forward.1} parent=1 // pred_check
      _
    $region27: #{actor_forward.1} parent=1 // pred_check_branch
      %26 = sbr.rel (0) target = $region29
    $region28: #{actor_forward.1} parent=1 // pred_region
      %28 = vsyncadd [#allocation3], 0
      %s30 = sshll.u32 %s6, 4
      %s31 = int_to_ptr.hbm [resolvable:$true] %s30
      %s32 = sshll.u32 [#allocation2], 4
      %s33 = int_to_ptr.vmem [resolvable:$true] %s32
      %35 = dma.hbm_to_vmem [thread:$0]  %s31, 16, %s33, [#allocation3]
    $region29: #{actor_forward.1} parent=1 // pred_fallthru
      _
    // Predicated region
    $region30: #{actor_forward.1} parent=1 // pred_check
      _
    $region31: #{actor_forward.1} parent=1 // pred_check_branch
      %37 = sbr.rel (0) target = $region33
    $region32: #{actor_forward.1} parent=1 // pred_region
      %39 = dma.done [#allocation3], 16
    $region33: #{actor_forward.1} parent=1 // pred_fallthru
      _
    %v40 = vld [vmem:[%s0] sm:$0xff]
    %v41 = vld [vmem:[%s1] sm:$0xff]
    %v42 = vld [vmem:[%s1 + $0x8] sm:$0xff]
    %v43 = vld [vmem:[%s2] sm:$0x1]
    %v45 = vperm.slane %v43, 0
    %vm47 = vcmask 130048
    %v49 = vsel %vm47, %v40, 0
    %51 = vmatpush.msra.mxu0 0.0
    %52 = vmatpush.msra.mxu0 0.0
    %53 = vmatpush.msra.mxu0 0.0
    %54 = vmatpush.msra.mxu0 0.0
    %55 = vmatpush.msra.mxu0 0.0
    %56 = vmatpush.msra.mxu0 0.0
    %57 = vmatpush.msra.mxu0 0.0
    %58 = vmatpush.msra.mxu0 0.0
    %59 = vmatpush.msra.mxu0 0.0
    %60 = vmatpush.msra.mxu0 0.0
    %61 = vmatpush.msra.mxu0 0.0
    %62 = vmatpush.msra.mxu0 0.0
    %63 = vmatpush.msra.mxu0 0.0
    %64 = vmatpush.msra.mxu0 0.0
    %65 = vmatpush.msra.mxu0 %v42
    %66 = vmatpush.msra.mxu0 %v41
    %67 = vmatmul.f32.gmra.mxu0 %v49
    %v68 = vpop.f32.mrf.mxu0
    %v69 = vadd.f32 %v45, %v68
    %70 = vdwg.mxu0
    %v71 = vmax.f32 %v69, 0.0
    %v72 = vld [vmem:[%s3] sm:$0xff]
    %v73 = vld [vmem:[%s3 + $0x8] sm:$0xff]
    %v74 = vld [vmem:[%s3 + $0x10] sm:$0xff]
    %v75 = vld [vmem:[%s3 + $0x18] sm:$0xff]
    %v76 = vld [vmem:[%s3 + $0x20] sm:$0xff]
    %v77 = vld [vmem:[%s3 + $0x28] sm:$0xff]
    %v78 = vld [vmem:[%s3 + $0x30] sm:$0xff]
    %v79 = vld [vmem:[%s3 + $0x38] sm:$0xff]
    %v80 = vld [vmem:[%s3 + $0x40] sm:$0xff]
    %v81 = vld [vmem:[%s3 + $0x48] sm:$0xff]
    %v82 = vld [vmem:[%s3 + $0x50] sm:$0xff]
    %v83 = vld [vmem:[%s3 + $0x58] sm:$0xff]
    %v84 = vld [vmem:[%s3 + $0x60] sm:$0xff]
    %v85 = vld [vmem:[%s3 + $0x68] sm:$0xff]
    %v86 = vld [vmem:[%s3 + $0x70] sm:$0xff]
    %v87 = vld [vmem:[%s3 + $0x78] sm:$0xff]
    %v88 = vld [vmem:[%s4] sm:$0x1]
    %v90 = vperm.slane %v88, 0
    %92 = vmatpush.msra.mxu0 %v87
    %93 = vmatpush.msra.mxu0 %v86
    %94 = vmatpush.msra.mxu0 %v85
    %95 = vmatpush.msra.mxu0 %v84
    %96 = vmatpush.msra.mxu0 %v83
    %97 = vmatpush.msra.mxu0 %v82
    %98 = vmatpush.msra.mxu0 %v81
    %99 = vmatpush.msra.mxu0 %v80
    %100 = vmatpush.msra.mxu0 %v79
    %101 = vmatpush.msra.mxu0 %v78
    %102 = vmatpush.msra.mxu0 %v77
    %103 = vmatpush.msra.mxu0 %v76
    %104 = vmatpush.msra.mxu0 %v75
    %105 = vmatpush.msra.mxu0 %v74
    %106 = vmatpush.msra.mxu0 %v73
    %107 = vmatpush.msra.mxu0 %v72
    %108 = vmatmul.f32.gmra.mxu0 %v71
    %v109 = vpop.f32.mrf.mxu0
    %v110 = vadd.f32 %v90, %v109
    %111 = vdwg.mxu0
    %v112 = vmax.f32 %v110, 0.0
    %v113 = vld [vmem:[%s5] sm:$0xff]
    %v114 = vld [vmem:[%s5 + $0x8] sm:$0xff]
    %v115 = vld [vmem:[%s5 + $0x10] sm:$0xff]
    %v116 = vld [vmem:[%s5 + $0x18] sm:$0xff]
    %v117 = vld [vmem:[%s5 + $0x20] sm:$0xff]
    %v118 = vld [vmem:[%s5 + $0x28] sm:$0xff]
    %v119 = vld [vmem:[%s5 + $0x30] sm:$0xff]
    %v120 = vld [vmem:[%s5 + $0x38] sm:$0xff]
    %v121 = vld [vmem:[%s5 + $0x40] sm:$0xff]
    %v122 = vld [vmem:[%s5 + $0x48] sm:$0xff]
    %v123 = vld [vmem:[%s5 + $0x50] sm:$0xff]
    %v124 = vld [vmem:[%s5 + $0x58] sm:$0xff]
    %v125 = vld [vmem:[%s5 + $0x60] sm:$0xff]
    %v126 = vld [vmem:[%s5 + $0x68] sm:$0xff]
    %v127 = vld [vmem:[%s5 + $0x70] sm:$0xff]
    %v128 = vld [vmem:[%s5 + $0x78] sm:$0xff]
    %v129 = vld [vmem:[#allocation2] sm:$0x1]
    %v131 = vperm.slane %v129, 0
    %133 = vmatpush.msra.mxu0 %v128
    %134 = vmatpush.msra.mxu0 %v127
    %135 = vmatpush.msra.mxu0 %v126
    %136 = vmatpush.msra.mxu0 %v125
    %137 = vmatpush.msra.mxu0 %v124
    %138 = vmatpush.msra.mxu0 %v123
    %139 = vmatpush.msra.mxu0 %v122
    %140 = vmatpush.msra.mxu0 %v121
    %141 = vmatpush.msra.mxu0 %v120
    %142 = vmatpush.msra.mxu0 %v119
    %143 = vmatpush.msra.mxu0 %v118
    %144 = vmatpush.msra.mxu0 %v117
    %145 = vmatpush.msra.mxu0 %v116
    %146 = vmatpush.msra.mxu0 %v115
    %147 = vmatpush.msra.mxu0 %v114
    %148 = vmatpush.msra.mxu0 %v113
    %149 = vmatmul.f32.gmra.mxu0 %v112
    %v150 = vpop.f32.mrf.mxu0
    %v151 = vadd.f32 %v131, %v150
    %152 = vdwg.mxu0
    %vm153 = vcmask 64512
    %154 = vst.msk [vmem:[%s7] sm:$0xff] %vm153, %v151
    // Predicated region
    $region34: #{actor_forward.1} parent=1 // pred_check
      _
    $region35: #{actor_forward.1} parent=1 // pred_check_branch
      %156 = sbr.rel (0) target = $region37
    $region36: #{actor_forward.1} parent=1 // pred_region
      _
    $region37: #{actor_forward.1} parent=1 // pred_fallthru
      _
    // Predicated region
    $region38: #{actor_forward.1} parent=1 // pred_check
      _
    $region39: #{actor_forward.1} parent=1 // pred_check_branch
      %158 = sbr.rel (0) target = $region41
    $region40: #{actor_forward.1} parent=1 // pred_region
      _
    $region41: #{actor_forward.1} parent=1 // pred_fallthru
      _
    %159 = vsyncpa [#allocation3], 1

</llo_original>
